<compile_context>
chip_gen: v6e
topology: v6e:2x2x1
jax: 0.10.0
libtpu: 0.0.40
codegen_flags: <defaults>
</compile_context>

<pallas_src>
import jax
import jax.numpy as jnp
from jax.experimental import pallas as pl
from jax.experimental.pallas import tpu as pltpu

_LANE = 128


def _round_down(a, b):
    return a // b * b


def _make_pool_kernel(tile, n_tiles, rem, inv_hw):
    """Fused global sum+max pool over the HW axis of one (c_blk, tile) slab."""
    n_groups = tile // _LANE if n_tiles > 1 else 0
    ragged = (n_tiles > 1) and (rem != tile)

    def kernel(x_ref, o_ref, sum_sc, max_sc):
        # x_ref: (c_blk, tile)   o_ref: (c_blk, 2)
        # sum_sc / max_sc: (c_blk, 128) f32 lane-wise running accumulators.
        if n_tiles == 1:
            # Single-tile fast path: no scratch, no masking needed.
            x = x_ref[...].astype(jnp.float32)
            avg = jnp.sum(x, axis=-1, keepdims=True) * inv_hw
            mx = jnp.max(x, axis=-1, keepdims=True)
            o_ref[:, 0:1] = avg.astype(o_ref.dtype)
            o_ref[:, 1:2] = mx.astype(o_ref.dtype)
            return

        t = pl.program_id(2)

        @pl.when(t == 0)
        def _init():
            sum_sc[...] = jnp.zeros(sum_sc.shape, sum_sc.dtype)
            max_sc[...] = jnp.full(max_sc.shape, -jnp.inf, max_sc.dtype)

        def accumulate(valid_lanes):
            # valid_lanes is a *static* Python int: full tiles take the
            # unmasked path; only the single partial 128-lane group of the
            # ragged last tile pays for an iota+cmp+select.
            s = sum_sc[...]
            m = max_sc[...]
            for g in range(n_groups):
                lo = g * _LANE
                if lo >= valid_lanes:          # group entirely OOB: skip
                    break
                xg = x_ref[:, lo:lo + _LANE].astype(jnp.float32)
                if lo + _LANE <= valid_lanes:  # fully valid group
                    s = s + xg
                    m = jnp.maximum(m, xg)
                else:                          # the one partial group
                    lane = jax.lax.broadcasted_iota(jnp.int32, xg.shape, 1)
                    ok = lane < (valid_lanes - lo)
                    s = s + jnp.where(ok, xg, 0.0)
                    m = jnp.maximum(m, jnp.where(ok, xg, -jnp.inf))
            sum_sc[...] = s
            max_sc[...] = m

        if ragged:
            @pl.when(t < n_tiles - 1)
            def _full_tile():
                accumulate(tile)

            @pl.when(t == n_tiles - 1)
            def _last_tile():
                accumulate(rem)
        else:
            accumulate(tile)

        @pl.when(t == n_tiles - 1)
        def _finalize():
            # Single cross-lane reduce of the lane-wise accumulators.
            avg = jnp.sum(sum_sc[...], axis=-1, keepdims=True) * inv_hw
            mx = jnp.max(max_sc[...], axis=-1, keepdims=True)
            o_ref[:, 0:1] = avg.astype(o_ref.dtype)
            o_ref[:, 1:2] = mx.astype(o_ref.dtype)

    return kernel


def _choose_c_split(B, C):
    # Second "parallel" grid axis: keeps both v7x TensorCores busy when B is
    # small (v5e/v6e have one TC and are unaffected).  Only split when each
    # C block stays sublane-aligned and big enough for chunky per-step slabs.
    if B >= 4:
        return 1
    for cand in (4, 2):
        blk = C // cand
        if C % cand == 0 and blk % 8 == 0 and blk >= 128:
            return cand
    return 1


def _channel_pool(x):
    """Fused global average+max pool: (B, C, HW) -> (B, C, 2) float32."""
    B, C, HW = x.shape
    n_c_blocks = _choose_c_split(B, C)
    c_blk = C // n_c_blocks

    # HW tile from a ~4 MiB per-buffer VMEM budget, lane-dense (multiple of
    # 128); no wrapper-side padding — the ragged last tile is masked in-kernel.
    itemsize = jnp.dtype(x.dtype).itemsize
    budget = 4 << 20
    tile_cap = _round_down(max(budget // (c_blk * itemsize), _LANE), _LANE)
    tile_cap = min(tile_cap, 128 * _LANE)      # cap unrolled lane-group count
    if HW <= tile_cap:
        tile, n_tiles, rem = HW, 1, HW
    else:
        tile = tile_cap
        n_tiles = (HW + tile - 1) // tile
        rem = HW - (n_tiles - 1) * tile

    # VMEM budget: double-buffered x slabs + scratch + tiny output block,
    # capped below physical VMEM (headroom on v7x; >32 MiB allowed on v5e/v6e).
    est = (2 * c_blk * tile * itemsize        # double-buffered x slabs
           + 2 * c_blk * _LANE * 4            # sum/max scratch
           + 2 * c_blk * 2 * 4)               # output block
    try:
        phys_vmem = int(pltpu.get_tpu_info().vmem_capacity_bytes)
    except Exception:
        phys_vmem = 64 << 20                  # conservative (v7x per-core)
    vmem_limit = int(min(max(32 << 20, 2 * est), phys_vmem * 3 // 4))

    return pl.pallas_call(
        _make_pool_kernel(tile, n_tiles, rem, 1.0 / float(HW)),
        out_shape=jax.ShapeDtypeStruct((B, C, 2), jnp.float32),
        grid_spec=pltpu.PrefetchScalarGridSpec(
            num_scalar_prefetch=0,
            grid=(B, n_c_blocks, n_tiles),
            in_specs=[pl.BlockSpec((pl.Squeezed(), c_blk, tile),
                                   lambda b, c, t: (b, c, t))],
            out_specs=pl.BlockSpec((pl.Squeezed(), c_blk, 2),
                                   lambda b, c, t: (b, c, 0)),
            scratch_shapes=[pltpu.VMEM((c_blk, _LANE), jnp.float32),  # sum
                            pltpu.VMEM((c_blk, _LANE), jnp.float32)], # max
        ),
        compiler_params=pltpu.CompilerParams(
            dimension_semantics=("parallel", "parallel", "arbitrary"),
            vmem_limit_bytes=vmem_limit),
    )(x)


def channel_attention1(x_nchw, fc1_w, fc2_w):
    """ChannelAttention1.forward.

    x_nchw : (B, C, H, W)
    fc1_w  : (C//ratio, C, 1, 1)  (1x1 conv, bias=False)
    fc2_w  : (C, C//ratio, 1, 1)  (1x1 conv, bias=False)
    returns: (B, C, 1, 1)
    """
    B, C, H, W = x_nchw.shape
    Ch = fc1_w.shape[0]

    pooled = _channel_pool(x_nchw.reshape(B, C, H * W))       # (B, C, 2) f32
    avg, mx = pooled[:, :, 0], pooled[:, :, 1]                # (B, C) each

    # Tiny bias-free MLP + sigmoid, hoisted out of the kernel (per review):
    #   fc2(relu(fc1(avg))) + fc2(relu(fc1(mx)))
    #     = W2 @ (relu(W1 @ avg) + relu(W1 @ mx))     (fc2 is linear)
    w1 = fc1_w.reshape(Ch, C).astype(jnp.float32)
    w2 = fc2_w.reshape(C, Ch).astype(jnp.float32)
    h = jnp.maximum(avg @ w1.T, 0.0) + jnp.maximum(mx @ w1.T, 0.0)   # (B, Ch)
    y = jax.nn.sigmoid(h @ w2.T)                                     # (B, C)
    return y.astype(x_nchw.dtype).reshape(B, C, 1, 1)


def _reference(x_nchw, fc1_w, fc2_w):
    B, C, H, W = x_nchw.shape
    Ch = fc1_w.shape[0]
    w1 = fc1_w.reshape(Ch, C).astype(jnp.float32)
    w2 = fc2_w.reshape(C, Ch).astype(jnp.float32)
    xf = x_nchw.astype(jnp.float32)
    avg = jnp.mean(xf, axis=(2, 3))        # (B, C)
    mx = jnp.max(xf, axis=(2, 3))          # (B, C)

    def mlp(v):
        return jnp.maximum(v @ w1.T, 0.0) @ w2.T

    out = jax.nn.sigmoid(mlp(avg) + mlp(mx))
    return out.reshape(B, C, 1, 1).astype(x_nchw.dtype)


if __name__ == "__main__":
    key = jax.random.PRNGKey(0)

    # Case 1: small shapes consistent with the module (single-tile fast path).
    k_x, k_w1, k_w2, key = jax.random.split(key, 4)
    B, C, H, W, ratio = 2, 32, 16, 16, 8
    Ch = C // ratio
    x = jax.random.normal(k_x, (B, C, H, W), dtype=jnp.float32)
    fc1_w = 0.3 * jax.random.normal(k_w1, (Ch, C, 1, 1), dtype=jnp.float32)
    fc2_w = 0.3 * jax.random.normal(k_w2, (C, Ch, 1, 1), dtype=jnp.float32)
    out = jax.block_until_ready(channel_attention1(x, fc1_w, fc2_w))
    ref = _reference(x, fc1_w, fc2_w)
    assert out.shape == (B, C, 1, 1)
    assert jnp.allclose(out, ref, atol=1e-4, rtol=1e-4), "case 1 mismatch"

    # Case 2: exercises the multi-tile path (ragged last tile with a masked
    # partial 128-lane group) and the C-split parallel axis.
    k_x, k_w1, k_w2, key = jax.random.split(key, 4)
    B, C, H, W, ratio = 1, 256, 100, 100, 8
    Ch = C // ratio
    x = jax.random.normal(k_x, (B, C, H, W), dtype=jnp.float32)
    fc1_w = 0.1 * jax.random.normal(k_w1, (Ch, C, 1, 1), dtype=jnp.float32)
    fc2_w = 0.1 * jax.random.normal(k_w2, (C, Ch, 1, 1), dtype=jnp.float32)
    out = jax.block_until_ready(channel_attention1(x, fc1_w, fc2_w))
    ref = _reference(x, fc1_w, fc2_w)
    assert out.shape == (B, C, 1, 1)
    assert jnp.allclose(out, ref, atol=1e-4, rtol=1e-4), "case 2 mismatch"

    print("KERNEL_OK")
</pallas_src>

<mosaic_0001>
module attributes {stable_mosaic.version = 11 : i64} {
  func.func @kernel(%arg0: i32, %arg1: i32, %arg2: i32, %arg3: memref<1x32x256xf32, #tpu.memory_space<vmem>>, %arg4: memref<1x32x2xf32, #tpu.memory_space<vmem>>, %arg5: memref<32x128xf32, #tpu.memory_space<vmem>>, %arg6: memref<32x128xf32, #tpu.memory_space<vmem>>) attributes {dimension_semantics = [#tpu.dimension_semantics<parallel>, #tpu.dimension_semantics<parallel>, #tpu.dimension_semantics<arbitrary>], iteration_bounds = array<i64: 2, 1, 1>, scalar_prefetch = 0 : i64, scratch_operands = 2 : i64, tpu.core_type = #tpu.core_type<tc>, window_params = [{transform_indices = @transform_0, window_bounds = array<i64: 1, 32, 256>}, {transform_indices = @transform_1, window_bounds = array<i64: 1, 32, 2>}]} {
    %c0 = arith.constant 0 : index
    %c0_0 = arith.constant 0 : index
    %c0_1 = arith.constant 0 : index
    %0 = vector.load %arg3[%c0, %c0_0, %c0_1] : memref<1x32x256xf32, #tpu.memory_space<vmem>>, vector<1x32x256xf32>
    %1 = vector.shape_cast %0 : vector<1x32x256xf32> to vector<32x256xf32>
    %cst = arith.constant dense<0.000000e+00> : vector<32xf32>
    %2 = vector.multi_reduction <add>, %1, %cst [1] : vector<32x256xf32> to vector<32xf32>
    %3 = vector.shape_cast %2 : vector<32xf32> to vector<32x1xf32>
    %cst_2 = arith.constant 3.906250e-03 : f32
    %4 = vector.broadcast %cst_2 : f32 to vector<32x1xf32>
    %5 = arith.mulf %3, %4 : vector<32x1xf32>
    %cst_3 = arith.constant dense<0xFF800000> : vector<32xf32>
    %6 = vector.multi_reduction <maximumf>, %1, %cst_3 [1] : vector<32x256xf32> to vector<32xf32>
    %7 = vector.shape_cast %6 : vector<32xf32> to vector<32x1xf32>
    %c0_4 = arith.constant 0 : index
    %c0_5 = arith.constant 0 : index
    %c0_6 = arith.constant 0 : index
    %8 = vector.load %arg4[%c0_4, %c0_5, %c0_6] : memref<1x32x2xf32, #tpu.memory_space<vmem>>, vector<1x32x1xf32>
    %9 = vector.shape_cast %8 : vector<1x32x1xf32> to vector<32x1xf32>
    %10 = vector.shape_cast %5 : vector<32x1xf32> to vector<1x32x1xf32>
    tpu.vector_store %arg4[%c0_4, %c0_5, %c0_6], %10 {strides = array<i32>} : memref<1x32x2xf32, #tpu.memory_space<vmem>>, vector<1x32x1xf32>,
    %c0_7 = arith.constant 0 : index
    %c0_8 = arith.constant 0 : index
    %c1 = arith.constant 1 : index
    %11 = vector.load %arg4[%c0_7, %c0_8, %c1] : memref<1x32x2xf32, #tpu.memory_space<vmem>>, vector<1x32x1xf32>
    %12 = vector.shape_cast %11 : vector<1x32x1xf32> to vector<32x1xf32>
    %13 = vector.shape_cast %7 : vector<32x1xf32> to vector<1x32x1xf32>
    tpu.vector_store %arg4[%c0_7, %c0_8, %c1], %13 {strides = array<i32>} : memref<1x32x2xf32, #tpu.memory_space<vmem>>, vector<1x32x1xf32>,
    return
  }
  func.func @transform_0(%arg0: i32, %arg1: i32, %arg2: i32) -> (i32, i32, i32) {
    %c0_i32 = arith.constant 0 : i32
    return %arg0, %arg1, %arg2 : i32, i32, i32
  }
  func.func @transform_1(%arg0: i32, %arg1: i32, %arg2: i32) -> (i32, i32, i32) {
    %c0_i32 = arith.constant 0 : i32
    %c0_i32_0 = arith.constant 0 : i32
    return %arg0, %arg1, %c0_i32 : i32, i32, i32
  }
}

</mosaic_0001>

<llo_original>
// kernel: tpu_custom_call.1
$region0: #{tpu_custom_call.1}
  #allocation0 [shape = 'u32[]', space=smem, size = 0x4, offset = 0x4, fixed_abs, tag = 'smem constant byte address 0x4 - core index']
  #allocation1 [shape = 'u32[144,128]{1,0:T(1,128)}', space=vmem, size = 0x12000, scoped, tag = 'internal scratch']
  #allocation2 [shape = 'f32[32,128]{1,0:T(8,128)}', space=vmem, size = 0x4000, scoped, tag = 'scratch operand']
  #allocation3 [shape = 'f32[32,128]{1,0:T(8,128)}', space=vmem, size = 0x4000, scoped, tag = 'scratch operand']
  %s0 = inlined_call_operand.hbm [shape: f32[2,32,256], index: 0, kind: input, shape index: {}]
  %s1 = inlined_call_operand.vmem [shape: f32[2,32,2], index: 1, kind: output, shape index: {}]
  %s2 = sld [smem:[#allocation0]]
  $region41: #{tpu_custom_call.1} parent=0
    _
  %s4 = ssub.s32 1, %s2
  %s5 = scalar_select 0, %s4, %s2
  $region1: #{tpu_custom_call.1} parent=0
    #allocation4 [shape = 'u8[65536]{0}', space=vmem, size = 0x10000, scoped, tag = 'input window, operand 0']
    #allocation5 [shape = 's32[2]{0}', space=sflag, size = 0x8, scoped, tag = 'scoped memory for tpu_custom_call.1']
    %6 = vsyncpa [#allocation5], 0
    %s7 = scalar_lea.sflag [#allocation5], 1
    %8 = vsyncpa %s7, 0
    loop: start=0, step=1, limit=4
    $region2: #{tpu_custom_call.1} parent=1 // loop_pre_header
      _
    $region3: #{tpu_custom_call.1} parent=1 // loop_header
      %s10 = sphi 0, %s14
      %p11 = scmp.ge.s32.totalorder %s10, 4
      %s17 = sphi 0, %s36
      %s18 = sphi 0, %s32
      %s19 = sphi 0, %s28
      %s20 = sphi 0, %s17
      %s21 = sphi 0, %s18
      %s22 = sphi 0, %s19
      %s23 = sphi 0, %s20
      %s24 = sphi 0, %s21
      %s25 = sphi 0, %s22
      %s43 = sphi 0, %s45
      %s46 = sphi 0, %s43
      %s47 = sphi 0, %s46
      %s63 = sphi 0, %s47
      %s71 = sphi 0, %s73
      %s74 = sphi 0, %s71
      %s75 = sphi 0, %s74
      %s91 = sphi 0, %s75
    $region4: #{tpu_custom_call.1} parent=1 // loop_header_branch
      %13 = sbr.rel (%p11) target = $region8
    $region5: #{tpu_custom_call.1} parent=1 // loop_body
      %s15 = ssub.s32 %s10, 1
      %s16 = ssub.s32 %s10, 2
      %s26 = sadd.s32 1, %s19
      %p27 = scmp.ge.s32.totalorder %s26, 1
      %s28 = scalar_select %p27, 0, %s26
      %s29 = sadd.s32 1, %s18
      %s30 = scalar_select %p27, %s29, %s18
      %p31 = scmp.ge.s32.totalorder %s30, 1
      %s32 = scalar_select %p31, 0, %s30
      %s33 = sadd.s32 1, %s17
      %s34 = scalar_select %p31, %s33, %s17
      %p35 = scmp.ge.s32.totalorder %s34, 2
      %s36 = scalar_select %p35, 0, %s34
      %s37 = ssub.s32 %s17, %s36
      %s38 = ssub.s32 %s18, %s32
      %s39 = sor.u32 %s37, %s38
      %s40 = ssub.s32 %s19, %s28
      %s41 = sor.u32 %s39, %s40
      %p42 = scmp.eq.s32.totalorder %s41, 0
      %s44 = sadd.s32 %s43, 1
      %s45 = scalar_select %p42, %s43, %s44
      %p48 = pneg %p42
      %p49 = scmp.eq.s32.totalorder %s10, 1
      %p50 = por %p48, %p49
      %p51 = scmp.ne.s32.totalorder %s43, %s46
      %p52 = scmp.eq.s32.totalorder %s10, 0
      %p53 = por %p51, %p52
      %p54 = scmp.ne.s32.totalorder %s43, %s46
      %p55 = scmp.eq.s32.totalorder %s15, 1
      %p56 = por %p54, %p55
      %p57 = scmp.ne.s32.totalorder %s46, %s47
      %p58 = scmp.eq.s32.totalorder %s15, 0
      %p59 = por %p57, %p58
      %p60 = scmp.ne.s32.totalorder %s46, %s47
      %p61 = scmp.eq.s32.totalorder %s16, 1
      %p62 = por %p60, %p61
      %p64 = scmp.ne.s32.totalorder %s47, %s63
      %p65 = scmp.eq.s32.totalorder %s16, 0
      %p66 = por %p64, %p65
      %s67 = ssub.s32 %s17, %s36
      %s68 = ssub.s32 %s18, %s32
      %s69 = sor.u32 %s67, %s68
      %p70 = scmp.eq.s32.totalorder %s69, 0
      %s72 = sadd.s32 %s71, 1
      %s73 = scalar_select %p70, %s71, %s72
      %p76 = pneg %p70
      %p77 = scmp.eq.s32.totalorder %s10, 1
      %p78 = por %p76, %p77
      %p79 = scmp.ne.s32.totalorder %s71, %s74
      %p80 = scmp.eq.s32.totalorder %s10, 0
      %p81 = por %p79, %p80
      %p82 = scmp.ne.s32.totalorder %s71, %s74
      %p83 = scmp.eq.s32.totalorder %s15, 1
      %p84 = por %p82, %p83
      %p85 = scmp.ne.s32.totalorder %s74, %s75
      %p86 = scmp.eq.s32.totalorder %s15, 0
      %p87 = por %p85, %p86
      %p88 = scmp.ne.s32.totalorder %s74, %s75
      %p89 = scmp.eq.s32.totalorder %s16, 1
      %p90 = por %p88, %p89
      %p92 = scmp.ne.s32.totalorder %s75, %s91
      %p93 = scmp.eq.s32.totalorder %s16, 0
      %p94 = por %p92, %p93
      %p95 = scmp.le.s32.totalorder 1, %s10
      %p96 = scmp.lt.s32.totalorder %s10, 3
      %p97 = pnand %p95, %p96
      %p98 = pneg %p97
      // Predicated region
      $region9: #{tpu_custom_call.1} parent=5 // pred_check
        _
      $region10: #{tpu_custom_call.1} parent=5 // pred_check_branch
        %100 = sbr.rel (%p97) target = $region12
      $region11: #{tpu_custom_call.1} parent=5 // pred_region
        %s101 = ssub.s32 %s10, 1
      $region12: #{tpu_custom_call.1} parent=5 // pred_fallthru
        _
      %p102 = scmp.lt.s32.totalorder %s10, 2
      // Predicated region
      $region13: #{tpu_custom_call.1} parent=5 // pred_check
        %p103 = pneg %p102
      $region14: #{tpu_custom_call.1} parent=5 // pred_check_branch
        %105 = sbr.rel (%p103) target = $region16
      $region15: #{tpu_custom_call.1} parent=5 // pred_region
        // Predicated region
        $region17: #{tpu_custom_call.1} parent=15 // pred_check
          %p106 = pneg %p53
        $region18: #{tpu_custom_call.1} parent=15 // pred_check_branch
          %108 = sbr.rel (%p106) target = $region20
        $region19: #{tpu_custom_call.1} parent=15 // pred_region
          %s109 = sand.u32 %s43, 1
          %s110 = scalar_lea.sflag [#allocation5], %s109
          %s111 = sand.u32 %s43, 1
          %s112 = smul.addr %s111, 64
          %s113 = scalar_lea.vmem [#allocation4], %s112
          %s114 = smul.u32 4, %s18
          %s115 = smul.u32 2, %s19
          %s117 = ssub.s32 1024, 1024
          %118 = vsyncadd %s110, %s117
          %s119 = smul.addr %s114, 2
          %s120 = sadd.s32 %s115, %s119
          %s121 = smul.addr %s17, 8
          %s122 = sadd.s32 %s120, %s121
          %s123 = smul.addr %s122, 128
          %s124 = scalar_lea.hbm %s0, %s123
          %s125 = sshll.u32 %s113, 4
          %s126 = int_to_ptr.vmem [resolvable:$true] %s125
          %131 = dma.hbm_to_vmem [thread:$0]  %s124, 1024, %s126, %s110, 256, 256, 16
        $region20: #{tpu_custom_call.1} parent=15 // pred_fallthru
          _
      $region16: #{tpu_custom_call.1} parent=5 // pred_fallthru
        _
      %p132 = scmp.le.s32.totalorder 1, %s10
      %p133 = scmp.lt.s32.totalorder %s10, 3
      %p134 = pnand %p132, %p133
      %p135 = pneg %p134
      // Predicated region
      $region21: #{tpu_custom_call.1} parent=5 // pred_check
        _
      $region22: #{tpu_custom_call.1} parent=5 // pred_check_branch
        %137 = sbr.rel (%p134) target = $region24
      $region23: #{tpu_custom_call.1} parent=5 // pred_region
        %s138 = ssub.s32 %s10, 1
        %s139 = sand.u32 %s46, 1
        %s140 = scalar_lea.sflag [#allocation5], %s139
        %s141 = sand.u32 %s46, 1
        %s142 = smul.addr %s141, 64
        %s143 = scalar_lea.vmem [#allocation4], %s142
        // Predicated region
        $region25: #{tpu_custom_call.1} parent=23 // pred_check
          %p144 = pneg %p59
        $region26: #{tpu_custom_call.1} parent=23 // pred_check_branch
          %146 = sbr.rel (%p144) target = $region28
        $region27: #{tpu_custom_call.1} parent=23 // pred_region
          %147 = dma.done %s140, 1024
        $region28: #{tpu_custom_call.1} parent=23 // pred_fallthru
          _
        %s148 = sand.u32 %s46, 1
        %s149 = scalar_lea.sflag [#allocation5], %s148
        %s150 = sand.u32 %s46, 1
        %s151 = smul.addr %s150, 64
        %s152 = scalar_lea.vmem [#allocation4], %s151
        %p153 = pneg %p59
        %p154 = pneg %p56
        %p155 = pneg %p87
        %p156 = pneg %p84
        %s157 = smul.u32 4, %s21
        %p158 = scmp.lt.s32.totalorder %s20, 1
        %s159 = scalar_select %p158, %s20, 1
        %p160 = scmp.lt.s32.totalorder %s157, 3
        %s161 = scalar_select %p160, %s157, 3
        %s162 = smul.addr %s159, 4
        %s163 = sadd.s32 %s161, %s162
        %s164 = smul.addr %s163, 8
        %s165 = scalar_lea.vmem %s1, %s164
        %s166 = smul.u32 4, %s21
        %s167 = smul.u32 2, %s22
        %s168 = smul.u32 4, %s21
        %p169 = scmp.lt.s32.totalorder %s20, 1
        %s170 = scalar_select %p169, %s20, 1
        %p171 = scmp.lt.s32.totalorder %s168, 3
        %s172 = scalar_select %p171, %s168, 3
        %s173 = smul.addr %s170, 4
        %s174 = sadd.s32 %s172, %s173
        %s175 = smul.addr %s174, 8
        %s176 = scalar_lea.vmem %s1, %s175
        %s177 = smul.u32 4, %s21
        %v178 = vld [vmem:[%s143] sm:$0xff]
        %v179 = vld [vmem:[%s143 + $0x8] sm:$0xff]
        %v180 = vld [vmem:[%s143 + $0x10] sm:$0xff]
        %v181 = vld [vmem:[%s143 + $0x18] sm:$0xff]
        %v182 = vld [vmem:[%s143 + $0x20] sm:$0xff]
        %v183 = vld [vmem:[%s143 + $0x28] sm:$0xff]
        %v184 = vld [vmem:[%s143 + $0x30] sm:$0xff]
        %v185 = vld [vmem:[%s143 + $0x38] sm:$0xff]
        %v186 = vadd.f32 %v178, %v179
        %187 = vadd.xlane.f32.xlu0 %v186
        %v188 = vpop.xlane.xlu0 %187
        %v189 = vadd.f32 %v180, %v181
        %190 = vadd.xlane.f32.xlu0 %v189
        %v191 = vpop.xlane.xlu0 %190
        %v192 = vadd.f32 %v182, %v183
        %193 = vadd.xlane.f32.xlu0 %v192
        %v194 = vpop.xlane.xlu0 %193
        %v195 = vadd.f32 %v184, %v185
        %196 = vadd.xlane.f32.xlu0 %v195
        %v197 = vpop.xlane.xlu0 %196
        %v198 = vmul.f32 %v188, 0.00390625
        %v199 = vmul.f32 %v191, 0.00390625
        %v200 = vmul.f32 %v194, 0.00390625
        %v201 = vmul.f32 %v197, 0.00390625
        %v202 = vmax.f32 %v178, %v179
        %203 = vmax.xlane.f32.xlu0 %v202
        %v204 = vpop.xlane.xlu0 %203
        %v205 = vmax.f32 %v180, %v181
        %206 = vmax.xlane.f32.xlu0 %v205
        %v207 = vpop.xlane.xlu0 %206
        %v208 = vmax.f32 %v182, %v183
        %209 = vmax.xlane.f32.xlu0 %v208
        %v210 = vpop.xlane.xlu0 %209
        %v211 = vmax.f32 %v184, %v185
        %212 = vmax.xlane.f32.xlu0 %v211
        %v213 = vpop.xlane.xlu0 %212
        %vm214 = vcmask 7168
        %215 = vst.msk [vmem:[%s176] sm:$0xff] %vm214, %v198
        %216 = vst.msk [vmem:[%s176 + $0x8] sm:$0xff] %vm214, %v199
        %217 = vst.msk [vmem:[%s176 + $0x10] sm:$0xff] %vm214, %v200
        %218 = vst.msk [vmem:[%s176 + $0x18] sm:$0xff] %vm214, %v201
        %vm219 = vcmask 15368
        %220 = vst.msk [vmem:[%s176] sm:$0xff] %vm219, %v204
        %221 = vst.msk [vmem:[%s176 + $0x8] sm:$0xff] %vm219, %v207
        %222 = vst.msk [vmem:[%s176 + $0x10] sm:$0xff] %vm219, %v210
        %223 = vst.msk [vmem:[%s176 + $0x18] sm:$0xff] %vm219, %v213
        %s224 = smul.u32 4, %s21
        %p225 = scmp.lt.s32.totalorder %s20, 1
        %s226 = scalar_select %p225, %s20, 1
        %p227 = scmp.lt.s32.totalorder %s224, 3
        %s228 = scalar_select %p227, %s224, 3
        %s229 = smul.addr %s226, 4
        %s230 = sadd.s32 %s228, %s229
        %s231 = smul.addr %s230, 8
        %s232 = scalar_lea.vmem %s1, %s231
        // Predicated region
        $region29: #{tpu_custom_call.1} parent=23 // pred_check
          %p233 = pneg %p84
        $region30: #{tpu_custom_call.1} parent=23 // pred_check_branch
          %235 = sbr.rel (%p233) target = $region32
        $region31: #{tpu_custom_call.1} parent=23 // pred_region
          %s236 = smul.u32 4, %s21
        $region32: #{tpu_custom_call.1} parent=23 // pred_fallthru
          _
      $region24: #{tpu_custom_call.1} parent=5 // pred_fallthru
        _
      %p237 = scmp.le.s32.totalorder 2, %s10
      // Predicated region
      $region33: #{tpu_custom_call.1} parent=5 // pred_check
        %p238 = pneg %p237
      $region34: #{tpu_custom_call.1} parent=5 // pred_check_branch
        %240 = sbr.rel (%p238) target = $region36
      $region35: #{tpu_custom_call.1} parent=5 // pred_region
        %s241 = ssub.s32 %s10, 2
        // Predicated region
        $region37: #{tpu_custom_call.1} parent=35 // pred_check
          %p242 = pneg %p90
        $region38: #{tpu_custom_call.1} parent=35 // pred_check_branch
          %244 = sbr.rel (%p242) target = $region40
        $region39: #{tpu_custom_call.1} parent=35 // pred_region
          %s245 = smul.u32 4, %s24
          %p246 = scmp.lt.s32.totalorder %s23, 1
          %s247 = scalar_select %p246, %s23, 1
          %p248 = scmp.lt.s32.totalorder %s245, 3
          %s249 = scalar_select %p248, %s245, 3
          %s250 = smul.addr %s247, 4
          %s251 = sadd.s32 %s249, %s250
          %s252 = smul.addr %s251, 8
          %s253 = scalar_lea.vmem %s1, %s252
        $region40: #{tpu_custom_call.1} parent=35 // pred_fallthru
          _
      $region36: #{tpu_custom_call.1} parent=5 // pred_fallthru
        _
    $region6: #{tpu_custom_call.1} parent=1 // loop_footer
      %s14 = sadd.s32 1, %s10
    $region7: #{tpu_custom_call.1} parent=1 // loop_footer_branch
      %9 = sbr.rel target = $region3
    $region8: #{tpu_custom_call.1} parent=1 // loop_exit
      _
    %254 = vsyncpa [#allocation5], 1
    %s255 = scalar_lea.sflag [#allocation5], 1
    %256 = vsyncpa %s255, 1

</llo_original>
